<compile_context>
chip_gen: v7x
topology: tpu7x:2x2x1
jax: 0.10.0
libtpu: 0.0.40
codegen_flags: <defaults>
</compile_context>

<pallas_src>
import functools

import jax
import jax.numpy as jnp
from jax import lax
from jax.experimental import pallas as pl
from jax.experimental.pallas import tpu as pltpu


# --------------------------------------------------------------------------
# Generation-aware VMEM policy helpers.
# --------------------------------------------------------------------------
def _vmem_capacity_bytes():
    try:
        return int(pltpu.get_tpu_info().vmem_capacity_bytes)
    except Exception:
        return 64 * 1024 * 1024  # conservative fallback (v7x per-TC VMEM)


def _pick_tile_hw(HW_pad, C_in, C_out, x_itemsize, out_itemsize, io_budget, cap=None):
    """Largest multiple-of-128 divisor of HW_pad whose double-buffered
    per-step in+out footprint fits the generation-aware io_budget."""
    best = 128
    t = 128
    while t <= HW_pad:
        if HW_pad % t == 0 and (cap is None or t <= cap):
            step_bytes = 2 * t * (C_in * x_itemsize + C_out * out_itemsize)
            if step_bytes <= io_budget:
                best = t
        t += 128
    return best


# --------------------------------------------------------------------------
# Kernel A: per-channel partial sum / sum-of-squares (BN statistics).
#   Grid: (N, HW_pad // tile_hw).  Each step lane-reduces its block to
#   (C_in, 1) and writes a distinct output block -> both axes "parallel".
# --------------------------------------------------------------------------
def _bn_stats_kernel(x_ref, sum_ref, sq_ref):
    x = x_ref[0].astype(jnp.float32)                       # (C_in, tile_hw)
    sum_ref[0, 0] = jnp.sum(x, axis=-1, keepdims=True)     # (C_in, 1)
    sq_ref[0, 0] = jnp.sum(x * x, axis=-1, keepdims=True)  # (C_in, 1)


def _bn_stats(x3d, *, tile_hw, vmem_limit):
    N, C_in, HW = x3d.shape
    n_chunks = HW // tile_hw
    itemsize = x3d.dtype.itemsize
    return pl.pallas_call(
        _bn_stats_kernel,
        out_shape=(
            jax.ShapeDtypeStruct((N, n_chunks, C_in, 1), jnp.float32),
            jax.ShapeDtypeStruct((N, n_chunks, C_in, 1), jnp.float32),
        ),
        grid_spec=pltpu.PrefetchScalarGridSpec(
            num_scalar_prefetch=0,
            grid=(N, n_chunks),
            in_specs=[pl.BlockSpec((1, C_in, tile_hw), lambda n, j: (n, 0, j))],
            out_specs=(
                pl.BlockSpec((1, 1, C_in, 1), lambda n, j: (n, j, 0, 0)),
                pl.BlockSpec((1, 1, C_in, 1), lambda n, j: (n, j, 0, 0)),
            ),
        ),
        compiler_params=pltpu.CompilerParams(
            dimension_semantics=("parallel", "parallel"),
            vmem_limit_bytes=vmem_limit,
        ),
        cost_estimate=pl.CostEstimate(
            flops=3 * N * C_in * HW,
            transcendentals=0,
            bytes_accessed=N * C_in * HW * itemsize + 2 * N * n_chunks * C_in * 4,
        ),
    )(x3d)


# --------------------------------------------------------------------------
# Kernel B: fused normalize (per-channel scale/shift) + ReLU + 1x1 conv.
#   out[n] = W_bf16(C_out, C_in) @ relu(x[n] * scale + shift), lanes = HW.
# --------------------------------------------------------------------------
def _bn_relu_conv_kernel(x_ref, scale_ref, shift_ref, w_ref, o_ref):
    x = x_ref[0].astype(jnp.float32)                            # (C_in, tile_hw)
    y = jnp.maximum(x * scale_ref[...] + shift_ref[...], 0.0)   # f32 BN + ReLU
    o_ref[0] = jnp.dot(
        w_ref[...],                      # (C_out, C_in) bf16, resident block
        y.astype(jnp.bfloat16),          # bf16 MXU matmul, f32 accumulation
        preferred_element_type=jnp.float32,
    ).astype(o_ref.dtype)                                        # (C_out, tile_hw)


def _bn_relu_conv(x3d, scale, shift, w_bf16, *, tile_hw, vmem_limit):
    N, C_in, HW = x3d.shape
    C_out = w_bf16.shape[0]
    x_itemsize = x3d.dtype.itemsize
    return pl.pallas_call(
        _bn_relu_conv_kernel,
        out_shape=jax.ShapeDtypeStruct((N, C_out, HW), x3d.dtype),
        grid_spec=pltpu.PrefetchScalarGridSpec(
            num_scalar_prefetch=0,
            grid=(N, HW // tile_hw),
            in_specs=[
                pl.BlockSpec((1, C_in, tile_hw), lambda n, j: (n, 0, j)),
                pl.BlockSpec((C_in, 1), lambda n, j: (0, 0)),
                pl.BlockSpec((C_in, 1), lambda n, j: (0, 0)),
                pl.BlockSpec((C_out, C_in), lambda n, j: (0, 0)),
            ],
            out_specs=pl.BlockSpec((1, C_out, tile_hw), lambda n, j: (n, 0, j)),
        ),
        compiler_params=pltpu.CompilerParams(
            dimension_semantics=("parallel", "parallel"),
            vmem_limit_bytes=vmem_limit,
        ),
        cost_estimate=pl.CostEstimate(
            flops=2 * N * HW * C_in * C_out + 3 * N * HW * C_in,
            transcendentals=0,
            bytes_accessed=N * HW * (C_in + C_out) * x_itemsize
            + C_in * C_out * 2
            + 2 * C_in * 4,
        ),
    )(x3d, scale, shift, w_bf16)


# --------------------------------------------------------------------------
# TransitionBlock forward
# --------------------------------------------------------------------------
@functools.partial(jax.jit, static_argnames=("drop_out", "max_tile_hw"))
def transition_block_forward(x_nchw, params, rng_key=None, *, drop_out=0.0,
                             max_tile_hw=None):
    """x_nchw: (N, C_in, H, W).  Returns (N, C_out, H, W)."""
    N, C_in, H, W = x_nchw.shape
    gamma, beta, conv_w = params["gamma"], params["beta"], params["conv_w"]
    C_out = conv_w.shape[0]
    eps = 1e-5
    HW = H * W

    # Generation-aware VMEM policy (v5e/v6e: 128 MiB, v7x: 64 MiB per TC).
    vmem_cap = _vmem_capacity_bytes()
    vmem_limit = int(0.75 * vmem_cap)      # ~96 MiB on 128 MiB parts, ~48 MiB on v7x
    io_budget = vmem_cap // 5              # double-buffered per-step in+out bytes

    # Free reshape (no data movement): NCHW -> (N, C_in, HW), lanes = HW.
    x3d = x_nchw.reshape(N, C_in, HW)

    # Pad HW to a multiple of 128 so every tile is lane-dense.  Zero padding
    # contributes nothing to the BN sums; padded conv columns are sliced off.
    HW_pad = ((HW + 127) // 128) * 128
    if HW_pad != HW:
        x3d = jnp.pad(x3d, ((0, 0), (0, 0), (0, HW_pad - HW)))

    x_itemsize = x3d.dtype.itemsize
    tile_hw = _pick_tile_hw(HW_pad, C_in, C_out, x_itemsize, x_itemsize,
                            io_budget, cap=max_tile_hw)

    # BatchNorm2d (training-mode batch statistics, biased variance).
    sums, sqs = _bn_stats(x3d, tile_hw=tile_hw, vmem_limit=vmem_limit)
    count = jnp.float32(N * HW)            # true element count (padding excluded)
    s = jnp.sum(sums, axis=(0, 1)).reshape(C_in)
    sq = jnp.sum(sqs, axis=(0, 1)).reshape(C_in)
    mean = s / count
    # Clamp guards the E[x^2]-E[x]^2 form against cancellation going negative.
    var = jnp.maximum(sq / count - mean * mean, 0.0)
    inv_std = lax.rsqrt(var + eps)
    g = gamma.astype(jnp.float32)
    b = beta.astype(jnp.float32)
    scale = (g * inv_std).reshape(C_in, 1)
    shift = (b - mean * g * inv_std).reshape(C_in, 1)

    # 1x1 conv weight (C_out, C_in, 1, 1) -> (C_out, C_in) in bf16 (MXU-native).
    w_bf16 = conv_w.reshape(C_out, C_in).astype(jnp.bfloat16)

    out3d = _bn_relu_conv(x3d, scale, shift, w_bf16,
                          tile_hw=tile_hw, vmem_limit=vmem_limit)

    if HW_pad != HW:
        out3d = out3d[:, :, :HW]
    out = out3d.reshape(N, C_out, H, W)

    # Dropout2d: training-mode channel dropout (plain JAX in the wrapper).
    # TODO(synk): fuse the channel mask into the conv kernel if it ever matters.
    if drop_out:
        if rng_key is None:
            raise ValueError("drop_out > 0 requires rng_key (training-mode Dropout2d)")
        keep = 1.0 - drop_out
        mask = jax.random.bernoulli(rng_key, keep, (N, C_out, 1, 1))
        out = jnp.where(mask, out / keep, 0.0).astype(out.dtype)
    return out


def _reference_forward(x_nchw, params):
    """Plain-JAX f32 reference matching PyTorch forward (training-mode BN, p=0)."""
    gamma, beta, conv_w = params["gamma"], params["beta"], params["conv_w"]
    eps = 1e-5
    mean = jnp.mean(x_nchw, axis=(0, 2, 3), keepdims=True)
    var = jnp.mean((x_nchw - mean) ** 2, axis=(0, 2, 3), keepdims=True)  # biased
    xn = (x_nchw - mean) / jnp.sqrt(var + eps)
    xn = xn * gamma.reshape(1, -1, 1, 1) + beta.reshape(1, -1, 1, 1)
    xn = jnp.maximum(xn, 0.0)
    return jnp.einsum("nchw,oc->nohw", xn, conv_w.reshape(conv_w.shape[0], -1))


if __name__ == "__main__":
    key = jax.random.PRNGKey(0)
    keys = jax.random.split(key, 6)

    def _run_case(kx, kw, kp, N, C_in, C_out, H, W, max_tile_hw=None,
                  random_affine=False):
        x = jax.random.normal(kx, (N, C_in, H, W), dtype=jnp.float32)
        if random_affine:
            kg, kb = jax.random.split(kp)
            gamma = 1.0 + 0.1 * jax.random.normal(kg, (C_in,), dtype=jnp.float32)
            beta = 0.1 * jax.random.normal(kb, (C_in,), dtype=jnp.float32)
        else:
            gamma = jnp.ones((C_in,), dtype=jnp.float32)
            beta = jnp.zeros((C_in,), dtype=jnp.float32)
        params = {
            "gamma": gamma,
            "beta": beta,
            "conv_w": jax.random.normal(kw, (C_out, C_in, 1, 1), dtype=jnp.float32)
            * (2.0 / C_in) ** 0.5,
        }
        out = transition_block_forward(x, params, drop_out=0.0,
                                       max_tile_hw=max_tile_hw)
        out = jax.block_until_ready(out)
        ref = _reference_forward(x, params)
        assert out.shape == (N, C_out, H, W), out.shape
        err = float(jnp.max(jnp.abs(out - ref)))
        # bf16 MXU matmul on normalized activations -> looser-than-f32 tolerance.
        assert jnp.allclose(out, ref, atol=8e-2, rtol=5e-2), err

    # Case 1: lane-aligned spatial size (16x16 -> HW=256), single HW tile.
    _run_case(keys[0], keys[1], keys[2], N=2, C_in=4, C_out=8, H=16, W=16)

    # Case 2: non-128-multiple HW (14x14=196 -> padded to 256), forced 2 HW
    # chunks, non-8-aligned channel counts, non-trivial gamma/beta.
    _run_case(keys[3], keys[4], keys[5], N=2, C_in=6, C_out=10, H=14, W=14,
              max_tile_hw=128, random_affine=True)

    print("KERNEL_OK")
</pallas_src>

<mosaic_0001>
module attributes {stable_mosaic.version = 11 : i64} {
  func.func @_bn_stats_kernel(%arg0: i32, %arg1: i32, %arg2: memref<1x4x256xf32, #tpu.memory_space<vmem>>, %arg3: memref<1x1x4x1xf32, #tpu.memory_space<vmem>>, %arg4: memref<1x1x4x1xf32, #tpu.memory_space<vmem>>) attributes {dimension_semantics = [#tpu.dimension_semantics<parallel>, #tpu.dimension_semantics<parallel>], iteration_bounds = array<i64: 2, 1>, scalar_prefetch = 0 : i64, scratch_operands = 0 : i64, tpu.core_type = #tpu.core_type<tc>, window_params = [{transform_indices = @transform_0, window_bounds = array<i64: 1, 4, 256>}, {transform_indices = @transform_1, window_bounds = array<i64: 1, 1, 4, 1>}, {transform_indices = @transform_2, window_bounds = array<i64: 1, 1, 4, 1>}]} {
    %c0 = arith.constant 0 : index
    %c0_0 = arith.constant 0 : index
    %c0_1 = arith.constant 0 : index
    %0 = vector.load %arg2[%c0, %c0_0, %c0_1] : memref<1x4x256xf32, #tpu.memory_space<vmem>>, vector<1x4x256xf32>
    %1 = vector.shape_cast %0 : vector<1x4x256xf32> to vector<4x256xf32>
    %cst = arith.constant dense<0.000000e+00> : vector<4xf32>
    %2 = vector.multi_reduction <add>, %1, %cst [1] : vector<4x256xf32> to vector<4xf32>
    %3 = vector.shape_cast %2 : vector<4xf32> to vector<4x1xf32>
    %c0_2 = arith.constant 0 : index
    %c0_3 = arith.constant 0 : index
    %c0_4 = arith.constant 0 : index
    %c0_5 = arith.constant 0 : index
    %4 = vector.load %arg3[%c0_2, %c0_3, %c0_4, %c0_5] : memref<1x1x4x1xf32, #tpu.memory_space<vmem>>, vector<1x1x4x1xf32>
    %5 = vector.shape_cast %4 : vector<1x1x4x1xf32> to vector<4x1xf32>
    %6 = vector.shape_cast %3 : vector<4x1xf32> to vector<1x1x4x1xf32>
    tpu.vector_store %arg3[%c0_2, %c0_3, %c0_4, %c0_5], %6 {strides = array<i32>} : memref<1x1x4x1xf32, #tpu.memory_space<vmem>>, vector<1x1x4x1xf32>,
    %7 = arith.mulf %1, %1 : vector<4x256xf32>
    %cst_6 = arith.constant dense<0.000000e+00> : vector<4xf32>
    %8 = vector.multi_reduction <add>, %7, %cst_6 [1] : vector<4x256xf32> to vector<4xf32>
    %9 = vector.shape_cast %8 : vector<4xf32> to vector<4x1xf32>
    %c0_7 = arith.constant 0 : index
    %c0_8 = arith.constant 0 : index
    %c0_9 = arith.constant 0 : index
    %c0_10 = arith.constant 0 : index
    %10 = vector.load %arg4[%c0_7, %c0_8, %c0_9, %c0_10] : memref<1x1x4x1xf32, #tpu.memory_space<vmem>>, vector<1x1x4x1xf32>
    %11 = vector.shape_cast %10 : vector<1x1x4x1xf32> to vector<4x1xf32>
    %12 = vector.shape_cast %9 : vector<4x1xf32> to vector<1x1x4x1xf32>
    tpu.vector_store %arg4[%c0_7, %c0_8, %c0_9, %c0_10], %12 {strides = array<i32>} : memref<1x1x4x1xf32, #tpu.memory_space<vmem>>, vector<1x1x4x1xf32>,
    return
  }
  func.func @transform_0(%arg0: i32, %arg1: i32) -> (i32, i32, i32) {
    %c0_i32 = arith.constant 0 : i32
    %c0_i32_0 = arith.constant 0 : i32
    return %arg0, %c0_i32, %arg1 : i32, i32, i32
  }
  func.func @transform_1(%arg0: i32, %arg1: i32) -> (i32, i32, i32, i32) {
    %c0_i32 = arith.constant 0 : i32
    %c0_i32_0 = arith.constant 0 : i32
    %c0_i32_1 = arith.constant 0 : i32
    return %arg0, %arg1, %c0_i32, %c0_i32_0 : i32, i32, i32, i32
  }
  func.func @transform_2(%arg0: i32, %arg1: i32) -> (i32, i32, i32, i32) {
    %c0_i32 = arith.constant 0 : i32
    %c0_i32_0 = arith.constant 0 : i32
    %c0_i32_1 = arith.constant 0 : i32
    return %arg0, %arg1, %c0_i32, %c0_i32_0 : i32, i32, i32, i32
  }
}

module attributes {stable_mosaic.version = 11 : i64} {
  func.func @_bn_relu_conv_kernel(%arg0: i32, %arg1: i32, %arg2: memref<1x4x256xf32, #tpu.memory_space<vmem>>, %arg3: memref<4x1xf32, #tpu.memory_space<vmem>>, %arg4: memref<4x1xf32, #tpu.memory_space<vmem>>, %arg5: memref<8x4xbf16, #tpu.memory_space<vmem>>, %arg6: memref<1x8x256xf32, #tpu.memory_space<vmem>>) attributes {dimension_semantics = [#tpu.dimension_semantics<parallel>, #tpu.dimension_semantics<parallel>], iteration_bounds = array<i64: 2, 1>, scalar_prefetch = 0 : i64, scratch_operands = 0 : i64, tpu.core_type = #tpu.core_type<tc>, window_params = [{transform_indices = @transform_0, window_bounds = array<i64: 1, 4, 256>}, {pipeline_mode = #tpu.pipeline_mode<synchronous>, transform_indices = @transform_1, window_bounds = array<i64: 4, 1>}, {pipeline_mode = #tpu.pipeline_mode<synchronous>, transform_indices = @transform_2, window_bounds = array<i64: 4, 1>}, {pipeline_mode = #tpu.pipeline_mode<synchronous>, transform_indices = @transform_3, window_bounds = array<i64: 8, 4>}, {transform_indices = @transform_4, window_bounds = array<i64: 1, 8, 256>}]} {
    %c0 = arith.constant 0 : index
    %c0_0 = arith.constant 0 : index
    %c0_1 = arith.constant 0 : index
    %0 = vector.load %arg2[%c0, %c0_0, %c0_1] : memref<1x4x256xf32, #tpu.memory_space<vmem>>, vector<1x4x256xf32>
    %1 = vector.shape_cast %0 : vector<1x4x256xf32> to vector<4x256xf32>
    %c0_2 = arith.constant 0 : index
    %c0_3 = arith.constant 0 : index
    %2 = vector.load %arg3[%c0_2, %c0_3] : memref<4x1xf32, #tpu.memory_space<vmem>>, vector<4x1xf32>
    %3 = vector.broadcast %2 : vector<4x1xf32> to vector<4x256xf32>
    %4 = arith.mulf %1, %3 : vector<4x256xf32>
    %c0_4 = arith.constant 0 : index
    %c0_5 = arith.constant 0 : index
    %5 = vector.load %arg4[%c0_4, %c0_5] : memref<4x1xf32, #tpu.memory_space<vmem>>, vector<4x1xf32>
    %6 = vector.broadcast %5 : vector<4x1xf32> to vector<4x256xf32>
    %7 = arith.addf %4, %6 : vector<4x256xf32>
    %cst = arith.constant 0.000000e+00 : f32
    %8 = vector.broadcast %cst : f32 to vector<4x256xf32>
    %9 = arith.maximumf %7, %8 : vector<4x256xf32>
    %c0_6 = arith.constant 0 : index
    %c0_7 = arith.constant 0 : index
    %10 = vector.load %arg5[%c0_6, %c0_7] : memref<8x4xbf16, #tpu.memory_space<vmem>>, vector<8x4xbf16>
    %11 = arith.truncf %9 : vector<4x256xf32> to vector<4x256xbf16>
    %cst_8 = arith.constant dense<0.000000e+00> : vector<8x256xf32>
    %12 = tpu.matmul %10, %11, %cst_8 {dimension_numbers = #tpu.dot_dimension_numbers<[1], [0], [0], [1], [0, 0, 1, 1], [], []>} : vector<8x4xbf16>, vector<4x256xbf16>, vector<8x256xf32> -> vector<8x256xf32>
    %c0_9 = arith.constant 0 : index
    %c0_10 = arith.constant 0 : index
    %c0_11 = arith.constant 0 : index
    %13 = vector.load %arg6[%c0_9, %c0_10, %c0_11] : memref<1x8x256xf32, #tpu.memory_space<vmem>>, vector<1x8x256xf32>
    %14 = vector.shape_cast %13 : vector<1x8x256xf32> to vector<8x256xf32>
    %15 = vector.shape_cast %12 : vector<8x256xf32> to vector<1x8x256xf32>
    tpu.vector_store %arg6[%c0_9, %c0_10, %c0_11], %15 {strides = array<i32>} : memref<1x8x256xf32, #tpu.memory_space<vmem>>, vector<1x8x256xf32>,
    return
  }
  func.func @transform_0(%arg0: i32, %arg1: i32) -> (i32, i32, i32) {
    %c0_i32 = arith.constant 0 : i32
    %c0_i32_0 = arith.constant 0 : i32
    return %arg0, %c0_i32, %arg1 : i32, i32, i32
  }
  func.func @transform_1(%arg0: i32, %arg1: i32) -> (i32, i32) {
    %c0_i32 = arith.constant 0 : i32
    %c0_i32_0 = arith.constant 0 : i32
    %c0_i32_1 = arith.constant 0 : i32
    return %c0_i32, %c0_i32_0 : i32, i32
  }
  func.func @transform_2(%arg0: i32, %arg1: i32) -> (i32, i32) {
    %c0_i32 = arith.constant 0 : i32
    %c0_i32_0 = arith.constant 0 : i32
    %c0_i32_1 = arith.constant 0 : i32
    return %c0_i32, %c0_i32_0 : i32, i32
  }
  func.func @transform_3(%arg0: i32, %arg1: i32) -> (i32, i32) {
    %c0_i32 = arith.constant 0 : i32
    %c0_i32_0 = arith.constant 0 : i32
    %c0_i32_1 = arith.constant 0 : i32
    return %c0_i32, %c0_i32_0 : i32, i32
  }
  func.func @transform_4(%arg0: i32, %arg1: i32) -> (i32, i32, i32) {
    %c0_i32 = arith.constant 0 : i32
    %c0_i32_0 = arith.constant 0 : i32
    return %arg0, %c0_i32, %arg1 : i32, i32, i32
  }
}

</mosaic_0001>

<llo_original>
// kernel: transition_block_forward.2
$region0: #{transition_block_forward.2}
  #allocation0 [shape = 'u32[]', space=smem, size = 0x4, offset = 0x4, fixed_abs, tag = 'smem constant byte address 0x4 - core index']
  #allocation1 [shape = 'u32[144,128]{1,0:T(1,128)}', space=vmem, size = 0x12000, scoped, tag = 'internal scratch']
  %s0 = inlined_call_operand.vmem [shape: f32[2,4,256], index: 0, kind: input, shape index: {}]
  %s1 = inlined_call_operand.vmem [shape: f32[2,1,4,1], index: 1, kind: output, shape index: {0}]
  %s2 = inlined_call_operand.vmem [shape: f32[2,1,4,1], index: 2, kind: output, shape index: {1}]
  %3 = xla_tuple %s1, %s2
  %s4 = sld [smem:[#allocation0]]
  $region45: #{transition_block_forward.2} parent=0
    _
  %s6 = ssub.s32 1, %s4
  %s7 = scalar_select 0, %s6, %s4
  loop: start=0, step=1, limit=4
  $region2: #{transition_block_forward.2} parent=0 // loop_pre_header
    _
  $region3: #{transition_block_forward.2} parent=0 // loop_header
    %s9 = sphi 0, %s13
    %p10 = scmp.ge.s32.totalorder %s9, 4
    %s16 = sphi 0, %s28
    %s17 = sphi 0, %s24
    %s18 = sphi 0, %s16
    %s19 = sphi 0, %s17
    %s20 = sphi 0, %s18
    %s21 = sphi 0, %s19
    %s33 = sphi 0, %s35
    %s36 = sphi 0, %s33
    %s37 = sphi 0, %s36
    %s53 = sphi 0, %s37
    %s61 = sphi 0, %s63
    %s64 = sphi 0, %s61
    %s65 = sphi 0, %s64
    %s81 = sphi 0, %s65
    %s89 = sphi 0, %s91
    %s92 = sphi 0, %s89
    %s93 = sphi 0, %s92
    %s109 = sphi 0, %s93
  $region4: #{transition_block_forward.2} parent=0 // loop_header_branch
    %12 = sbr.rel (%p10) target = $region8
  $region5: #{transition_block_forward.2} parent=0 // loop_body
    %s14 = ssub.s32 %s9, 1
    %s15 = ssub.s32 %s9, 2
    %s22 = sadd.s32 1, %s17
    %p23 = scmp.ge.s32.totalorder %s22, 1
    %s24 = scalar_select %p23, 0, %s22
    %s25 = sadd.s32 1, %s16
    %s26 = scalar_select %p23, %s25, %s16
    %p27 = scmp.ge.s32.totalorder %s26, 2
    %s28 = scalar_select %p27, 0, %s26
    %s29 = ssub.s32 %s16, %s28
    %s30 = ssub.s32 %s17, %s24
    %s31 = sor.u32 %s29, %s30
    %p32 = scmp.eq.s32.totalorder %s31, 0
    %s34 = sadd.s32 %s33, 1
    %s35 = scalar_select %p32, %s33, %s34
    %p38 = pneg %p32
    %p39 = scmp.eq.s32.totalorder %s9, 1
    %p40 = por %p38, %p39
    %p41 = scmp.ne.s32.totalorder %s33, %s36
    %p42 = scmp.eq.s32.totalorder %s9, 0
    %p43 = por %p41, %p42
    %p44 = scmp.ne.s32.totalorder %s33, %s36
    %p45 = scmp.eq.s32.totalorder %s14, 1
    %p46 = por %p44, %p45
    %p47 = scmp.ne.s32.totalorder %s36, %s37
    %p48 = scmp.eq.s32.totalorder %s14, 0
    %p49 = por %p47, %p48
    %p50 = scmp.ne.s32.totalorder %s36, %s37
    %p51 = scmp.eq.s32.totalorder %s15, 1
    %p52 = por %p50, %p51
    %p54 = scmp.ne.s32.totalorder %s37, %s53
    %p55 = scmp.eq.s32.totalorder %s15, 0
    %p56 = por %p54, %p55
    %s57 = ssub.s32 %s16, %s28
    %s58 = ssub.s32 %s17, %s24
    %s59 = sor.u32 %s57, %s58
    %p60 = scmp.eq.s32.totalorder %s59, 0
    %s62 = sadd.s32 %s61, 1
    %s63 = scalar_select %p60, %s61, %s62
    %p66 = pneg %p60
    %p67 = scmp.eq.s32.totalorder %s9, 1
    %p68 = por %p66, %p67
    %p69 = scmp.ne.s32.totalorder %s61, %s64
    %p70 = scmp.eq.s32.totalorder %s9, 0
    %p71 = por %p69, %p70
    %p72 = scmp.ne.s32.totalorder %s61, %s64
    %p73 = scmp.eq.s32.totalorder %s14, 1
    %p74 = por %p72, %p73
    %p75 = scmp.ne.s32.totalorder %s64, %s65
    %p76 = scmp.eq.s32.totalorder %s14, 0
    %p77 = por %p75, %p76
    %p78 = scmp.ne.s32.totalorder %s64, %s65
    %p79 = scmp.eq.s32.totalorder %s15, 1
    %p80 = por %p78, %p79
    %p82 = scmp.ne.s32.totalorder %s65, %s81
    %p83 = scmp.eq.s32.totalorder %s15, 0
    %p84 = por %p82, %p83
    %s85 = ssub.s32 %s16, %s28
    %s86 = ssub.s32 %s17, %s24
    %s87 = sor.u32 %s85, %s86
    %p88 = scmp.eq.s32.totalorder %s87, 0
    %s90 = sadd.s32 %s89, 1
    %s91 = scalar_select %p88, %s89, %s90
    %p94 = pneg %p88
    %p95 = scmp.eq.s32.totalorder %s9, 1
    %p96 = por %p94, %p95
    %p97 = scmp.ne.s32.totalorder %s89, %s92
    %p98 = scmp.eq.s32.totalorder %s9, 0
    %p99 = por %p97, %p98
    %p100 = scmp.ne.s32.totalorder %s89, %s92
    %p101 = scmp.eq.s32.totalorder %s14, 1
    %p102 = por %p100, %p101
    %p103 = scmp.ne.s32.totalorder %s92, %s93
    %p104 = scmp.eq.s32.totalorder %s14, 0
    %p105 = por %p103, %p104
    %p106 = scmp.ne.s32.totalorder %s92, %s93
    %p107 = scmp.eq.s32.totalorder %s15, 1
    %p108 = por %p106, %p107
    %p110 = scmp.ne.s32.totalorder %s93, %s109
    %p111 = scmp.eq.s32.totalorder %s15, 0
    %p112 = por %p110, %p111
    %p113 = scmp.le.s32.totalorder 1, %s9
    %p114 = scmp.lt.s32.totalorder %s9, 3
    %p115 = pnand %p113, %p114
    %p116 = pneg %p115
    // Predicated region
    $region9: #{transition_block_forward.2} parent=5 // pred_check
      _
    $region10: #{transition_block_forward.2} parent=5 // pred_check_branch
      %118 = sbr.rel (%p115) target = $region12
    $region11: #{transition_block_forward.2} parent=5 // pred_region
      %s119 = ssub.s32 %s9, 1
    $region12: #{transition_block_forward.2} parent=5 // pred_fallthru
      _
    %p120 = scmp.lt.s32.totalorder %s9, 2
    // Predicated region
    $region13: #{transition_block_forward.2} parent=5 // pred_check
      %p121 = pneg %p120
    $region14: #{transition_block_forward.2} parent=5 // pred_check_branch
      %123 = sbr.rel (%p121) target = $region16
    $region15: #{transition_block_forward.2} parent=5 // pred_region
      // Predicated region
      $region17: #{transition_block_forward.2} parent=15 // pred_check
        %p124 = pneg %p43
      $region18: #{transition_block_forward.2} parent=15 // pred_check_branch
        %126 = sbr.rel (%p124) target = $region20
      $region19: #{transition_block_forward.2} parent=15 // pred_region
        %s127 = smul.u32 2, %s17
        %p128 = scmp.lt.s32.totalorder %s16, 1
        %s129 = scalar_select %p128, %s16, 1
        %p130 = scmp.lt.s32.totalorder %s127, 1
        %s131 = scalar_select %p130, %s127, 1
        %s132 = smul.addr %s129, 2
        %s133 = sadd.s32 %s131, %s132
        %s134 = smul.addr %s133, 4
        %s135 = scalar_lea.vmem %s0, %s134
        %s136 = smul.u32 2, %s17
      $region20: #{transition_block_forward.2} parent=15 // pred_fallthru
        _
    $region16: #{transition_block_forward.2} parent=5 // pred_fallthru
      _
    %p137 = scmp.le.s32.totalorder 1, %s9
    %p138 = scmp.lt.s32.totalorder %s9, 3
    %p139 = pnand %p137, %p138
    %p140 = pneg %p139
    // Predicated region
    $region21: #{transition_block_forward.2} parent=5 // pred_check
      _
    $region22: #{transition_block_forward.2} parent=5 // pred_check_branch
      %142 = sbr.rel (%p139) target = $region24
    $region23: #{transition_block_forward.2} parent=5 // pred_region
      %s143 = ssub.s32 %s9, 1
      %s144 = smul.u32 2, %s19
      %p145 = scmp.lt.s32.totalorder %s18, 1
      %s146 = scalar_select %p145, %s18, 1
      %p147 = scmp.lt.s32.totalorder %s144, 1
      %s148 = scalar_select %p147, %s144, 1
      %s149 = smul.addr %s146, 2
      %s150 = sadd.s32 %s148, %s149
      %s151 = smul.addr %s150, 4
      %s152 = scalar_lea.vmem %s0, %s151
      %p153 = pneg %p49
      %p154 = pneg %p46
      %p155 = pneg %p77
      %p156 = pneg %p74
      %p157 = scmp.lt.s32.totalorder %s18, 1
      %s158 = scalar_select %p157, %s18, 1
      %p159 = scmp.lt.s32.totalorder %s19, 0
      %s160 = scalar_select %p159, %s19, 0
      %s161 = sadd.s32 %s160, %s158
      %s162 = smul.addr %s161, 4
      %s163 = scalar_lea.vmem %s1, %s162
      %p164 = pneg %p105
      %p165 = pneg %p102
      %p166 = scmp.lt.s32.totalorder %s18, 1
      %s167 = scalar_select %p166, %s18, 1
      %p168 = scmp.lt.s32.totalorder %s19, 0
      %s169 = scalar_select %p168, %s19, 0
      %s170 = sadd.s32 %s169, %s167
      %s171 = smul.addr %s170, 4
      %s172 = scalar_lea.vmem %s2, %s171
      %s173 = smul.u32 2, %s19
      %p174 = scmp.lt.s32.totalorder %s18, 1
      %s175 = scalar_select %p174, %s18, 1
      %p176 = scmp.lt.s32.totalorder %s173, 1
      %s177 = scalar_select %p176, %s173, 1
      %s178 = smul.addr %s175, 2
      %s179 = sadd.s32 %s177, %s178
      %s180 = smul.addr %s179, 4
      %s181 = scalar_lea.vmem %s0, %s180
      %s182 = smul.u32 2, %s19
      %p183 = scmp.lt.s32.totalorder %s18, 1
      %s184 = scalar_select %p183, %s18, 1
      %p185 = scmp.lt.s32.totalorder %s19, 0
      %s186 = scalar_select %p185, %s19, 0
      %s187 = sadd.s32 %s186, %s184
      %s188 = smul.addr %s187, 4
      %s189 = scalar_lea.vmem %s1, %s188
      %p190 = scmp.lt.s32.totalorder %s18, 1
      %s191 = scalar_select %p190, %s18, 1
      %p192 = scmp.lt.s32.totalorder %s19, 0
      %s193 = scalar_select %p192, %s19, 0
      %s194 = sadd.s32 %s193, %s191
      %s195 = smul.addr %s194, 4
      %s196 = scalar_lea.vmem %s2, %s195
      %v197 = vld [vmem:[%s181] sm:$0xff]
      %v199 = vcombine.high %v197, %v197
      %vm201 = vcmask 1043456
      %v202 = vsel %vm201, %v197, 0.0
      %v203 = vsel %vm201, %v199, 0.0
      %v204 = vadd.f32 %v202, %v203
      %205 = vadd.xlane.f32.xlu0 %v204
      %v206 = vpop.xlane.xlu0 %205
      %vm207 = vcmask 3072
      %208 = vst.msk [vmem:[%s189] sm:$0xf] %vm207, %v206
      %v209 = vmul.f32 %v197, %v197
      %v211 = vcombine.high %v209, %v209
      %v213 = vsel %vm201, %v209, 0.0
      %v214 = vsel %vm201, %v211, 0.0
      %v215 = vadd.f32 %v213, %v214
      %216 = vadd.xlane.f32.xlu0 %v215
      %v217 = vpop.xlane.xlu0 %216
      %218 = vst.msk [vmem:[%s196] sm:$0xf] %vm207, %v217
      %p219 = scmp.lt.s32.totalorder %s18, 1
      %s220 = scalar_select %p219, %s18, 1
      %p221 = scmp.lt.s32.totalorder %s19, 0
      %s222 = scalar_select %p221, %s19, 0
      %s223 = sadd.s32 %s222, %s220
      %s224 = smul.addr %s223, 4
      %s225 = scalar_lea.vmem %s1, %s224
      %p226 = scmp.lt.s32.totalorder %s18, 1
      %s227 = scalar_select %p226, %s18, 1
      %p228 = scmp.lt.s32.totalorder %s19, 0
      %s229 = scalar_select %p228, %s19, 0
      %s230 = sadd.s32 %s229, %s227
      %s231 = smul.addr %s230, 4
      %s232 = scalar_lea.vmem %s2, %s231
      // Predicated region
      $region25: #{transition_block_forward.2} parent=23 // pred_check
        %p233 = pneg %p74
      $region26: #{transition_block_forward.2} parent=23 // pred_check_branch
        %235 = sbr.rel (%p233) target = $region28
      $region27: #{transition_block_forward.2} parent=23 // pred_region
        _
      $region28: #{transition_block_forward.2} parent=23 // pred_fallthru
        _
      // Predicated region
      $region29: #{transition_block_forward.2} parent=23 // pred_check
        %p236 = pneg %p102
      $region30: #{transition_block_forward.2} parent=23 // pred_check_branch
        %238 = sbr.rel (%p236) target = $region32
      $region31: #{transition_block_forward.2} parent=23 // pred_region
        _
      $region32: #{transition_block_forward.2} parent=23 // pred_fallthru
        _
    $region24: #{transition_block_forward.2} parent=5 // pred_fallthru
      _
    %p239 = scmp.le.s32.totalorder 2, %s9
    // Predicated region
    $region33: #{transition_block_forward.2} parent=5 // pred_check
      %p240 = pneg %p239
    $region34: #{transition_block_forward.2} parent=5 // pred_check_branch
      %242 = sbr.rel (%p240) target = $region36
    $region35: #{transition_block_forward.2} parent=5 // pred_region
      %s243 = ssub.s32 %s9, 2
      // Predicated region
      $region37: #{transition_block_forward.2} parent=35 // pred_check
        %p244 = pneg %p80
      $region38: #{transition_block_forward.2} parent=35 // pred_check_branch
        %246 = sbr.rel (%p244) target = $region40
      $region39: #{transition_block_forward.2} parent=35 // pred_region
        %p247 = scmp.lt.s32.totalorder %s20, 1
        %s248 = scalar_select %p247, %s20, 1
        %p249 = scmp.lt.s32.totalorder %s21, 0
        %s250 = scalar_select %p249, %s21, 0
        %s251 = sadd.s32 %s250, %s248
        %s252 = smul.addr %s251, 4
        %s253 = scalar_lea.vmem %s1, %s252
      $region40: #{transition_block_forward.2} parent=35 // pred_fallthru
        _
      // Predicated region
      $region41: #{transition_block_forward.2} parent=35 // pred_check
        %p254 = pneg %p108
      $region42: #{transition_block_forward.2} parent=35 // pred_check_branch
        %256 = sbr.rel (%p254) target = $region44
      $region43: #{transition_block_forward.2} parent=35 // pred_region
        %p257 = scmp.lt.s32.totalorder %s20, 1
        %s258 = scalar_select %p257, %s20, 1
        %p259 = scmp.lt.s32.totalorder %s21, 0
        %s260 = scalar_select %p259, %s21, 0
        %s261 = sadd.s32 %s260, %s258
        %s262 = smul.addr %s261, 4
        %s263 = scalar_lea.vmem %s2, %s262
      $region44: #{transition_block_forward.2} parent=35 // pred_fallthru
        _
    $region36: #{transition_block_forward.2} parent=5 // pred_fallthru
      _
  $region6: #{transition_block_forward.2} parent=0 // loop_footer
    %s13 = sadd.s32 1, %s9
  $region7: #{transition_block_forward.2} parent=0 // loop_footer_branch
    %8 = sbr.rel target = $region3
  $region8: #{transition_block_forward.2} parent=0 // loop_exit
    _

// kernel: transition_block_forward.3
$region0: #{transition_block_forward.3}
  #allocation0 [shape = 'u32[]', space=smem, size = 0x4, offset = 0x4, fixed_abs, tag = 'smem constant byte address 0x4 - core index']
  #allocation1 [shape = 'u32[144,128]{1,0:T(1,128)}', space=vmem, size = 0x12000, scoped, tag = 'internal scratch']
  %s0 = inlined_call_operand.vmem [shape: f32[2,4,256], index: 0, kind: input, shape index: {}]
  %s1 = inlined_call_operand.vmem [shape: f32[4,1], index: 1, kind: input, shape index: {}]
  %s2 = inlined_call_operand.vmem [shape: f32[4,1], index: 2, kind: input, shape index: {}]
  %s3 = inlined_call_operand.vmem [shape: bf16[8,4], index: 3, kind: input, shape index: {}]
  %s4 = inlined_call_operand.vmem [shape: f32[2,8,256], index: 4, kind: output, shape index: {}]
  %s5 = sld [smem:[#allocation0]]
  $region49: #{transition_block_forward.3} parent=0
    _
  %s7 = ssub.s32 1, %s5
  %s8 = scalar_select 0, %s7, %s5
  loop: start=0, step=1, limit=4
  $region2: #{transition_block_forward.3} parent=0 // loop_pre_header
    _
  $region3: #{transition_block_forward.3} parent=0 // loop_header
    %s10 = sphi 0, %s14
    %p11 = scmp.ge.s32.totalorder %s10, 4
    %s17 = sphi 0, %s29
    %s18 = sphi 0, %s25
    %s19 = sphi 0, %s17
    %s20 = sphi 0, %s18
    %s21 = sphi 0, %s19
    %s22 = sphi 0, %s20
    %s34 = sphi 0, %s36
    %s37 = sphi 0, %s34
    %s38 = sphi 0, %s37
    %s54 = sphi 0, %s38
    %s58 = sphi 0, %s58
    %s60 = sphi 0, %s58
    %s61 = sphi 0, %s60
    %s75 = sphi 0, %s61
    %s79 = sphi 0, %s79
    %s81 = sphi 0, %s79
    %s82 = sphi 0, %s81
    %s96 = sphi 0, %s82
    %s100 = sphi 0, %s100
    %s102 = sphi 0, %s100
    %s103 = sphi 0, %s102
    %s117 = sphi 0, %s103
    %s125 = sphi 0, %s127
    %s128 = sphi 0, %s125
    %s129 = sphi 0, %s128
    %s145 = sphi 0, %s129
  $region4: #{transition_block_forward.3} parent=0 // loop_header_branch
    %13 = sbr.rel (%p11) target = $region8
  $region5: #{transition_block_forward.3} parent=0 // loop_body
    %s15 = ssub.s32 %s10, 1
    %s16 = ssub.s32 %s10, 2
    %s23 = sadd.s32 1, %s18
    %p24 = scmp.ge.s32.totalorder %s23, 1
    %s25 = scalar_select %p24, 0, %s23
    %s26 = sadd.s32 1, %s17
    %s27 = scalar_select %p24, %s26, %s17
    %p28 = scmp.ge.s32.totalorder %s27, 2
    %s29 = scalar_select %p28, 0, %s27
    %s30 = ssub.s32 %s17, %s29
    %s31 = ssub.s32 %s18, %s25
    %s32 = sor.u32 %s30, %s31
    %p33 = scmp.eq.s32.totalorder %s32, 0
    %s35 = sadd.s32 %s34, 1
    %s36 = scalar_select %p33, %s34, %s35
    %p39 = pneg %p33
    %p40 = scmp.eq.s32.totalorder %s10, 1
    %p41 = por %p39, %p40
    %p42 = scmp.ne.s32.totalorder %s34, %s37
    %p43 = scmp.eq.s32.totalorder %s10, 0
    %p44 = por %p42, %p43
    %p45 = scmp.ne.s32.totalorder %s34, %s37
    %p46 = scmp.eq.s32.totalorder %s15, 1
    %p47 = por %p45, %p46
    %p48 = scmp.ne.s32.totalorder %s37, %s38
    %p49 = scmp.eq.s32.totalorder %s15, 0
    %p50 = por %p48, %p49
    %p51 = scmp.ne.s32.totalorder %s37, %s38
    %p52 = scmp.eq.s32.totalorder %s16, 1
    %p53 = por %p51, %p52
    %p55 = scmp.ne.s32.totalorder %s38, %s54
    %p56 = scmp.eq.s32.totalorder %s16, 0
    %p57 = por %p55, %p56
    %s59 = sadd.s32 %s58, 1
    %p62 = scmp.eq.s32.totalorder %s10, 1
    %p63 = scmp.ne.s32.totalorder %s58, %s60
    %p64 = scmp.eq.s32.totalorder %s10, 0
    %p65 = por %p63, %p64
    %p66 = scmp.ne.s32.totalorder %s58, %s60
    %p67 = scmp.eq.s32.totalorder %s15, 1
    %p68 = por %p66, %p67
    %p69 = scmp.ne.s32.totalorder %s60, %s61
    %p70 = scmp.eq.s32.totalorder %s15, 0
    %p71 = por %p69, %p70
    %p72 = scmp.ne.s32.totalorder %s60, %s61
    %p73 = scmp.eq.s32.totalorder %s16, 1
    %p74 = por %p72, %p73
    %p76 = scmp.ne.s32.totalorder %s61, %s75
    %p77 = scmp.eq.s32.totalorder %s16, 0
    %p78 = por %p76, %p77
    %s80 = sadd.s32 %s79, 1
    %p83 = scmp.eq.s32.totalorder %s10, 1
    %p84 = scmp.ne.s32.totalorder %s79, %s81
    %p85 = scmp.eq.s32.totalorder %s10, 0
    %p86 = por %p84, %p85
    %p87 = scmp.ne.s32.totalorder %s79, %s81
    %p88 = scmp.eq.s32.totalorder %s15, 1
    %p89 = por %p87, %p88
    %p90 = scmp.ne.s32.totalorder %s81, %s82
    %p91 = scmp.eq.s32.totalorder %s15, 0
    %p92 = por %p90, %p91
    %p93 = scmp.ne.s32.totalorder %s81, %s82
    %p94 = scmp.eq.s32.totalorder %s16, 1
    %p95 = por %p93, %p94
    %p97 = scmp.ne.s32.totalorder %s82, %s96
    %p98 = scmp.eq.s32.totalorder %s16, 0
    %p99 = por %p97, %p98
    %s101 = sadd.s32 %s100, 1
    %p104 = scmp.eq.s32.totalorder %s10, 1
    %p105 = scmp.ne.s32.totalorder %s100, %s102
    %p106 = scmp.eq.s32.totalorder %s10, 0
    %p107 = por %p105, %p106
    %p108 = scmp.ne.s32.totalorder %s100, %s102
    %p109 = scmp.eq.s32.totalorder %s15, 1
    %p110 = por %p108, %p109
    %p111 = scmp.ne.s32.totalorder %s102, %s103
    %p112 = scmp.eq.s32.totalorder %s15, 0
    %p113 = por %p111, %p112
    %p114 = scmp.ne.s32.totalorder %s102, %s103
    %p115 = scmp.eq.s32.totalorder %s16, 1
    %p116 = por %p114, %p115
    %p118 = scmp.ne.s32.totalorder %s103, %s117
    %p119 = scmp.eq.s32.totalorder %s16, 0
    %p120 = por %p118, %p119
    %s121 = ssub.s32 %s17, %s29
    %s122 = ssub.s32 %s18, %s25
    %s123 = sor.u32 %s121, %s122
    %p124 = scmp.eq.s32.totalorder %s123, 0
    %s126 = sadd.s32 %s125, 1
    %s127 = scalar_select %p124, %s125, %s126
    %p130 = pneg %p124
    %p131 = scmp.eq.s32.totalorder %s10, 1
    %p132 = por %p130, %p131
    %p133 = scmp.ne.s32.totalorder %s125, %s128
    %p134 = scmp.eq.s32.totalorder %s10, 0
    %p135 = por %p133, %p134
    %p136 = scmp.ne.s32.totalorder %s125, %s128
    %p137 = scmp.eq.s32.totalorder %s15, 1
    %p138 = por %p136, %p137
    %p139 = scmp.ne.s32.totalorder %s128, %s129
    %p140 = scmp.eq.s32.totalorder %s15, 0
    %p141 = por %p139, %p140
    %p142 = scmp.ne.s32.totalorder %s128, %s129
    %p143 = scmp.eq.s32.totalorder %s16, 1
    %p144 = por %p142, %p143
    %p146 = scmp.ne.s32.totalorder %s129, %s145
    %p147 = scmp.eq.s32.totalorder %s16, 0
    %p148 = por %p146, %p147
    %p149 = scmp.le.s32.totalorder 1, %s10
    %p150 = scmp.lt.s32.totalorder %s10, 3
    %p151 = pnand %p149, %p150
    %p152 = pneg %p151
    // Predicated region
    $region9: #{transition_block_forward.3} parent=5 // pred_check
      _
    $region10: #{transition_block_forward.3} parent=5 // pred_check_branch
      %154 = sbr.rel (%p151) target = $region12
    $region11: #{transition_block_forward.3} parent=5 // pred_region
      %s155 = ssub.s32 %s10, 1
      // Predicated region
      $region13: #{transition_block_forward.3} parent=11 // pred_check
        %p156 = pneg %p71
      $region14: #{transition_block_forward.3} parent=11 // pred_check_branch
        %158 = sbr.rel (%p156) target = $region16
      $region15: #{transition_block_forward.3} parent=11 // pred_region
        _
      $region16: #{transition_block_forward.3} parent=11 // pred_fallthru
        _
      // Predicated region
      $region17: #{transition_block_forward.3} parent=11 // pred_check
        %p159 = pneg %p92
      $region18: #{transition_block_forward.3} parent=11 // pred_check_branch
        %161 = sbr.rel (%p159) target = $region20
      $region19: #{transition_block_forward.3} parent=11 // pred_region
        _
      $region20: #{transition_block_forward.3} parent=11 // pred_fallthru
        _
      // Predicated region
      $region21: #{transition_block_forward.3} parent=11 // pred_check
        %p162 = pneg %p113
      $region22: #{transition_block_forward.3} parent=11 // pred_check_branch
        %164 = sbr.rel (%p162) target = $region24
      $region23: #{transition_block_forward.3} parent=11 // pred_region
        _
      $region24: #{transition_block_forward.3} parent=11 // pred_fallthru
        _
    $region12: #{transition_block_forward.3} parent=5 // pred_fallthru
      _
    %p165 = scmp.lt.s32.totalorder %s10, 2
    // Predicated region
    $region25: #{transition_block_forward.3} parent=5 // pred_check
      %p166 = pneg %p165
    $region26: #{transition_block_forward.3} parent=5 // pred_check_branch
      %168 = sbr.rel (%p166) target = $region28
    $region27: #{transition_block_forward.3} parent=5 // pred_region
      // Predicated region
      $region29: #{transition_block_forward.3} parent=27 // pred_check
        %p169 = pneg %p44
      $region30: #{transition_block_forward.3} parent=27 // pred_check_branch
        %171 = sbr.rel (%p169) target = $region32
      $region31: #{transition_block_forward.3} parent=27 // pred_region
        %s172 = smul.u32 2, %s18
        %p173 = scmp.lt.s32.totalorder %s17, 1
        %s174 = scalar_select %p173, %s17, 1
        %p175 = scmp.lt.s32.totalorder %s172, 1
        %s176 = scalar_select %p175, %s172, 1
        %s177 = smul.addr %s174, 2
        %s178 = sadd.s32 %s176, %s177
        %s179 = smul.addr %s178, 4
        %s180 = scalar_lea.vmem %s0, %s179
        %s181 = smul.u32 2, %s18
      $region32: #{transition_block_forward.3} parent=27 // pred_fallthru
        _
    $region28: #{transition_block_forward.3} parent=5 // pred_fallthru
      _
    %p182 = scmp.le.s32.totalorder 1, %s10
    %p183 = scmp.lt.s32.totalorder %s10, 3
    %p184 = pnand %p182, %p183
    %p185 = pneg %p184
    // Predicated region
    $region33: #{transition_block_forward.3} parent=5 // pred_check
      _
    $region34: #{transition_block_forward.3} parent=5 // pred_check_branch
      %187 = sbr.rel (%p184) target = $region36
    $region35: #{transition_block_forward.3} parent=5 // pred_region
      %s188 = ssub.s32 %s10, 1
      %s189 = smul.u32 2, %s20
      %p190 = scmp.lt.s32.totalorder %s19, 1
      %s191 = scalar_select %p190, %s19, 1
      %p192 = scmp.lt.s32.totalorder %s189, 1
      %s193 = scalar_select %p192, %s189, 1
      %s194 = smul.addr %s191, 2
      %s195 = sadd.s32 %s193, %s194
      %s196 = smul.addr %s195, 4
      %s197 = scalar_lea.vmem %s0, %s196
      %p198 = pneg %p50
      %p199 = pneg %p47
      %p200 = pneg %p71
      %p201 = pneg %p68
      %p202 = pneg %p92
      %p203 = pneg %p89
      %p204 = pneg %p113
      %p205 = pneg %p110
      %p206 = pneg %p141
      %p207 = pneg %p138
      %s208 = smul.u32 2, %s20
      %p209 = scmp.lt.s32.totalorder %s19, 1
      %s210 = scalar_select %p209, %s19, 1
      %p211 = scmp.lt.s32.totalorder %s208, 1
      %s212 = scalar_select %p211, %s208, 1
      %s213 = smul.addr %s210, 2
      %s214 = sadd.s32 %s212, %s213
      %s215 = smul.addr %s214, 8
      %s216 = scalar_lea.vmem %s4, %s215
      %s217 = smul.u32 2, %s20
      %p218 = scmp.lt.s32.totalorder %s19, 1
      %s219 = scalar_select %p218, %s19, 1
      %p220 = scmp.lt.s32.totalorder %s217, 1
      %s221 = scalar_select %p220, %s217, 1
      %s222 = smul.addr %s219, 2
      %s223 = sadd.s32 %s221, %s222
      %s224 = smul.addr %s223, 4
      %s225 = scalar_lea.vmem %s0, %s224
      %s226 = smul.u32 2, %s20
      %s227 = smul.u32 2, %s20
      %p228 = scmp.lt.s32.totalorder %s19, 1
      %s229 = scalar_select %p228, %s19, 1
      %p230 = scmp.lt.s32.totalorder %s227, 1
      %s231 = scalar_select %p230, %s227, 1
      %s232 = smul.addr %s229, 2
      %s233 = sadd.s32 %s231, %s232
      %s234 = smul.addr %s233, 8
      %s235 = scalar_lea.vmem %s4, %s234
      %s236 = smul.u32 2, %s20
      %v238 = vld [vmem:[%s225] sm:$0xff]
      %v239 = vld [vmem:[%s1] sm:$0xf]
      %241 = vset.pattern.permute.xlu0 0
      %242 = vperm.xlu0 %241, %v239
      %v243 = vpop.permute.xlu0 %242
      %v245 = vunpack.c.l.s4 839922192
      %v246 = vunpack.c.0.s8 %v245
      %v247 = vlaneseq
      %v248 = vshrl.u32 %v247, 7
      %v249 = vsub.s32 %v246, %v248
      %v250 = vrot.slane %v243, %v249
      %v252 = vmul.f32 %v238, %v250
      %v253 = vld [vmem:[%s2] sm:$0xf]
      %255 = vset.pattern.permute.xlu0 0
      %256 = vperm.xlu0 %255, %v253
      %v257 = vpop.permute.xlu0 %256
      %v259 = vunpack.c.l.s4 839922192
      %v260 = vunpack.c.0.s8 %v259
      %v261 = vlaneseq
      %v262 = vshrl.u32 %v261, 7
      %v263 = vsub.s32 %v260, %v262
      %v264 = vrot.slane %v257, %v263
      %v266 = vadd.f32 %v252, %v264
      %v267 = vmax.f32 %v266, 0.0
      %v268 = vld [vmem:[%s3] sm:$0xf]
      %v270 = vcombine.high %v267, %v267
      %v272 = vpack.c.bf16 %v267, %v267
      %v273 = vpack.c.bf16 %v270, %v270
      %vm274 = vcmask 31744
      %v276 = vsel %vm274, %v268, 0
      %vm278 = vcmask 1041408
      %v280 = vsel %vm278, %v272, 0
      %v283 = vsel %vm278, %v273, 0
      %285 = vmatprep.subr.bf16.mxu0 %v283
      %286 = vmatpush1.bf16.msra.mxu0 %v280
      %287 = vmatprep.subr.bf16.mxu0 0
      %288 = vmatpush1.bf16.msra.mxu0 0
      %289 = vmatprep.subr.bf16.mxu0 0
      %290 = vmatpush1.bf16.msra.mxu0 0
      %291 = vmatprep.subr.bf16.mxu0 0
      %292 = vmatpush1.bf16.msra.mxu0 0
      %293 = vmatprep.subr.bf16.mxu0 0
      %294 = vmatpush1.bf16.msra.mxu0 0
      %295 = vmatprep.subr.bf16.mxu0 0
      %296 = vmatpush1.bf16.msra.mxu0 0
      %297 = vmatprep.subr.bf16.mxu0 0
      %298 = vmatpush1.bf16.msra.mxu0 0
      %299 = vmatprep.subr.bf16.mxu0 0
      %300 = vmatpush1.bf16.msra.mxu0 0
      %301 = vmatprep.subr.bf16.mxu0 0
      %302 = vmatpush1.bf16.msra.mxu0 0
      %303 = vmatprep.subr.bf16.mxu0 0
      %304 = vmatpush1.bf16.msra.mxu0 0
      %305 = vmatprep.subr.bf16.mxu0 0
      %306 = vmatpush1.bf16.msra.mxu0 0
      %307 = vmatprep.subr.bf16.mxu0 0
      %308 = vmatpush1.bf16.msra.mxu0 0
      %309 = vmatprep.subr.bf16.mxu0 0
      %310 = vmatpush1.bf16.msra.mxu0 0
      %311 = vmatprep.subr.bf16.mxu0 0
      %312 = vmatpush1.bf16.msra.mxu0 0
      %313 = vmatprep.subr.bf16.mxu0 0
      %314 = vmatpush1.bf16.msra.mxu0 0
      %315 = vmatprep.subr.bf16.mxu0 0
      %316 = vmatpush1.bf16.msra.mxu0 0
      %317 = vmatprep.mubr.bf16.mxu0 0
      %318 = vmatmul.mubr.bf16.gmra.mrb[0].mxu0 %v276
      %v319 = vpop.f32.mrb[0].mxu0
      %v320 = vadd.f32 0.0, %v319
      %v321 = vpop.f32.mrb[0].mxu0
      %v322 = vadd.f32 0.0, %v321
      %v323 = vpop.f32.mrb[0].mxu0
      %v324 = vpop.f32.mrb[0].mxu0
      %325 = vdwg.mxu0
      %326 = vst [vmem:[%s235] sm:$0xff] %v320
      %327 = vst [vmem:[%s235 + $0x8] sm:$0xff] %v322
      %s328 = smul.u32 2, %s20
      %p329 = scmp.lt.s32.totalorder %s19, 1
      %s330 = scalar_select %p329, %s19, 1
      %p331 = scmp.lt.s32.totalorder %s328, 1
      %s332 = scalar_select %p331, %s328, 1
      %s333 = smul.addr %s330, 2
      %s334 = sadd.s32 %s332, %s333
      %s335 = smul.addr %s334, 8
      %s336 = scalar_lea.vmem %s4, %s335
      // Predicated region
      $region37: #{transition_block_forward.3} parent=35 // pred_check
        %p337 = pneg %p138
      $region38: #{transition_block_forward.3} parent=35 // pred_check_branch
        %339 = sbr.rel (%p337) target = $region40
      $region39: #{transition_block_forward.3} parent=35 // pred_region
        %s340 = smul.u32 2, %s20
      $region40: #{transition_block_forward.3} parent=35 // pred_fallthru
        _
    $region36: #{transition_block_forward.3} parent=5 // pred_fallthru
      _
    %p341 = scmp.le.s32.totalorder 2, %s10
    // Predicated region
    $region41: #{transition_block_forward.3} parent=5 // pred_check
      %p342 = pneg %p341
    $region42: #{transition_block_forward.3} parent=5 // pred_check_branch
      %344 = sbr.rel (%p342) target = $region44
    $region43: #{transition_block_forward.3} parent=5 // pred_region
      %s345 = ssub.s32 %s10, 2
      // Predicated region
      $region45: #{transition_block_forward.3} parent=43 // pred_check
        %p346 = pneg %p144
      $region46: #{transition_block_forward.3} parent=43 // pred_check_branch
        %348 = sbr.rel (%p346) target = $region48
      $region47: #{transition_block_forward.3} parent=43 // pred_region
        %s349 = smul.u32 2, %s22
        %p350 = scmp.lt.s32.totalorder %s21, 1
        %s351 = scalar_select %p350, %s21, 1
        %p352 = scmp.lt.s32.totalorder %s349, 1
        %s353 = scalar_select %p352, %s349, 1
        %s354 = smul.addr %s351, 2
        %s355 = sadd.s32 %s353, %s354
        %s356 = smul.addr %s355, 8
        %s357 = scalar_lea.vmem %s4, %s356
      $region48: #{transition_block_forward.3} parent=43 // pred_fallthru
        _
    $region44: #{transition_block_forward.3} parent=5 // pred_fallthru
      _
  $region6: #{transition_block_forward.3} parent=0 // loop_footer
    %s14 = sadd.s32 1, %s10
  $region7: #{transition_block_forward.3} parent=0 // loop_footer_branch
    %9 = sbr.rel target = $region3
  $region8: #{transition_block_forward.3} parent=0 // loop_exit
    _

</llo_original>
